<compile_context>
chip_gen: v6e
topology: v6e:2x2x1
jax: 0.10.0
libtpu: 0.0.40
codegen_flags: <defaults>
</compile_context>

<pallas_src>
import functools
import math

import jax
import jax.numpy as jnp
from jax.experimental import pallas as pl
from jax.experimental.pallas import tpu as pltpu

LN_EPS = 1e-5


def _vmem_limit_bytes():
    """Scoped-VMEM limit with headroom for this chip."""
    try:
        cap = int(pltpu.get_tpu_info().vmem_capacity_bytes)
    except Exception:
        cap = 0
    if cap <= 0:
        cap = 64 * 1024 * 1024  # assume the smallest (64 MiB VMEM) if unknown
    # 64 MiB physical -> 48 MiB limit (v7x-class); 128 MiB -> 96 MiB (v5e/v6e).
    return min(cap * 3 // 4, 96 * 1024 * 1024)


_VMEM_LIMIT_BYTES = _vmem_limit_bytes()


def _merge_ln_reduce_kernel(xe_ref, xo_ref, we_ref, wo_ref, b_ref, o_ref):
    """Fused 2x2-merge + LayerNorm(4C) + Linear(4C->2C) for one row-group tile.

    xe_ref: (th, Wp/2, 2C)  even-h rows  ([x0 | x2] per merged position)
    xo_ref: (th, Wp/2, 2C)  odd-h rows   ([x1 | x3] per merged position)
    we_ref: (2C, 2C)        gamma-folded weight rows hitting [x0 | x2]
    wo_ref: (2C, 2C)        gamma-folded weight rows hitting [x1 | x3]
    b_ref:  (1, 2C)         beta @ W^T (precomputed output bias)
    o_ref:  (th * Wp/2, 2C)
    """
    rows = o_ref.shape[0]
    c2 = xe_ref.shape[-1]            # 2C
    inv_4c = 1.0 / (2.0 * c2)        # 1 / 4C

    xe = xe_ref[...].reshape(rows, c2).astype(jnp.float32)
    xo = xo_ref[...].reshape(rows, c2).astype(jnp.float32)

    # Single-pass LayerNorm statistics over the full 4C vector (order-free).
    s = jnp.sum(xe, axis=-1, keepdims=True) + jnp.sum(xo, axis=-1, keepdims=True)
    ss = (jnp.sum(xe * xe, axis=-1, keepdims=True)
          + jnp.sum(xo * xo, axis=-1, keepdims=True))
    mean = s * inv_4c
    var = jnp.maximum(ss * inv_4c - mean * mean, 0.0)
    inv = jax.lax.rsqrt(var + LN_EPS)

    # Center only; the per-row 1/sigma scale commutes with the linear layer
    # and is applied once on the (rows, 2C) output instead of the 4C input.
    de = (xe - mean).astype(we_ref.dtype)
    do = (xo - mean).astype(wo_ref.dtype)

    acc = jnp.dot(de, we_ref[...], preferred_element_type=jnp.float32)
    acc = acc + jnp.dot(do, wo_ref[...], preferred_element_type=jnp.float32)
    acc = acc * inv + b_ref[...].astype(jnp.float32)
    o_ref[...] = acc.astype(o_ref.dtype)


def _pick_row_group_tile(R, Wp2, per_rowgroup_bytes, budget_bytes, sublane_rows,
                         min_steps=4, target_rows=1024):
    """Pick the number of 2-row groups `th` processed per grid step.

    Goals (in priority order):
      (1) th*Wp2 is a multiple of `sublane_rows` (dtype-aware (8,128) rule),
      (2) per-step VMEM footprint (double-buffered blocks + f32 temps) fits
          `budget_bytes`,
      (3) >= `min_steps` grid steps (>= 2 per TensorCore on dual-core chips)
          as long as blocks keep >= `target_rows` output rows,
      (4) otherwise the largest block that fits.
    `th` need NOT divide R: grid = cdiv(R, th) and the ragged last block's
    out-of-range rows are dropped on store.
    """
    th_unit = sublane_rows // math.gcd(Wp2, sublane_rows)
    cap = max(1, int(budget_bytes) // max(int(per_rowgroup_bytes), 1))
    th = min(R, cap)

    if R > 1:
        # Largest th still giving >= min_steps steps under ceil-division.
        th_steps = max(1, (R - 1) // max(min_steps - 1, 1))
        if th_steps * Wp2 >= target_rows:
            th = min(th, th_steps)
        elif th >= R and R >= 2 * th_unit:
            # Small problem: take 2 steps so compute/writeback can overlap the
            # next input DMA while keeping sublane-aligned blocks.
            th = min(th, -(-R // 2))

    # Snap down to the alignment quantum (round up for tiny R).
    th = max(th_unit, (th // th_unit) * th_unit)
    return th


@functools.partial(jax.jit, static_argnames=("H", "W", "block_budget_bytes"))
def patch_merging(x, H, W, gamma, beta, w_t, block_budget_bytes=None):
    """Forward pass of PatchMerging.

    Args:
      x:     (B, H*W, C)
      gamma: (4C,)    LayerNorm weight
      beta:  (4C,)    LayerNorm bias
      w_t:   (4C, 2C) reduction weight (transposed from torch's (2C, 4C))
    Returns:
      (B, (Hp//2)*(Wp//2), 2C)
    """
    B, L, C = x.shape
    assert L == H * W, "input feature has wrong size"
    C2 = 2 * C

    xg = x.reshape(B, H, W, C)
    if (H % 2 == 1) or (W % 2 == 1):
        # TODO(synk): for odd H/W, handle the boundary row/column in-kernel
        # (masked contributions) instead of materializing a padded HBM copy.
        xg = jnp.pad(xg, ((0, 0), (0, H % 2), (0, W % 2), (0, 0)))
    Hp, Wp = xg.shape[1], xg.shape[2]
    R, Wp2 = B * (Hp // 2), Wp // 2
    M = R * Wp2

    # Free contiguous reinterpretation:
    #   x4[r, p, j, :] = [ xg[b, 2i+p, 2j, :] | xg[b, 2i+p, 2j+1, :] ]
    # with r = b*(Hp//2)+i, so parity 0 rows hold [x0|x2], parity 1 [x1|x3].
    x4 = xg.reshape(R, 2, Wp2, C2)

    # Fold LayerNorm affine params into the weight / a precomputed bias and
    # split the weight into the halves hitting the even-/odd-row chunks.
    gamma32 = gamma.astype(jnp.float32)
    beta32 = beta.astype(jnp.float32)
    w32 = w_t.astype(jnp.float32)                                    # (4C, 2C)
    wg = gamma32[:, None] * w32
    w_even = jnp.concatenate([wg[0:C], wg[2 * C:3 * C]], axis=0)     # [x0|x2]
    w_odd = jnp.concatenate([wg[C:2 * C], wg[3 * C:4 * C]], axis=0)  # [x1|x3]
    bias = (beta32 @ w32).reshape(1, C2)

    mm_dtype = jnp.bfloat16 if x.dtype == jnp.bfloat16 else jnp.float32
    w_even = w_even.astype(mm_dtype)
    w_odd = w_odd.astype(mm_dtype)

    in_isz = jnp.dtype(x.dtype).itemsize
    out_isz = in_isz
    mm_isz = jnp.dtype(mm_dtype).itemsize

    # --- VMEM accounting (per grid step) -------------------------------------
    # Pipelined blocks are double-buffered (x2).  In-kernel f32 temps (xe/xo
    # upcasts, centered de/do, f32 accumulator) add ~5 f32 copies of one
    # row-group's elements.
    per_rg_in = 2 * Wp2 * C2 * in_isz                 # xe + xo rows
    per_rg_out = Wp2 * C2 * out_isz
    per_rg_tmp = 5 * Wp2 * C2 * 4
    per_rg = 2 * (per_rg_in + per_rg_out) + per_rg_tmp
    fixed = 2 * (2 * C2 * C2 * mm_isz) + C2 * 4       # weights (2-buffered) + bias

    vmem_limit = _VMEM_LIMIT_BYTES
    if block_budget_bytes is None:
        block_budget_bytes = max(per_rg, (vmem_limit * 11) // 20 - fixed)

    sublane_rows = max(8, 32 // out_isz)              # 8 f32 / 16 bf16 / 32 int8
    th = _pick_row_group_tile(R, Wp2, per_rg, block_budget_bytes, sublane_rows)
    rows_blk = th * Wp2
    grid = (pl.cdiv(R, th),)

    cost = pl.CostEstimate(
        flops=int(2 * M * (4 * C) * C2),
        transcendentals=int(M),
        bytes_accessed=int(M * 4 * C * in_isz + M * C2 * out_isz
                           + 2 * C2 * C2 * mm_isz + C2 * 4),
    )

    out2d = pl.pallas_call(
        _merge_ln_reduce_kernel,
        out_shape=jax.ShapeDtypeStruct((M, C2), x.dtype),
        grid_spec=pltpu.PrefetchScalarGridSpec(
            num_scalar_prefetch=0,
            grid=grid,
            in_specs=[
                # Same HBM array addressed twice; the squeezed parity dim's
                # index selects even/odd rows, so the de-interleave happens in
                # the input DMA and x is still read from HBM exactly once.
                pl.BlockSpec((th, None, Wp2, C2), lambda i: (i, 0, 0, 0)),
                pl.BlockSpec((th, None, Wp2, C2), lambda i: (i, 1, 0, 0)),
                pl.BlockSpec((C2, C2), lambda i: (0, 0)),
                pl.BlockSpec((C2, C2), lambda i: (0, 0)),
                pl.BlockSpec((1, C2), lambda i: (0, 0)),
            ],
            out_specs=pl.BlockSpec((rows_blk, C2), lambda i: (i, 0)),
        ),
        compiler_params=pltpu.CompilerParams(
            dimension_semantics=("parallel",),
            vmem_limit_bytes=int(vmem_limit),
        ),
        cost_estimate=cost,
    )(x4, x4, w_even, w_odd, bias)

    return out2d.reshape(B, (Hp // 2) * Wp2, C2)


def _reference(x, H, W, gamma, beta, w_t):
    """Pure-JAX reference mirroring the torch forward."""
    B, L, C = x.shape
    xg = x.reshape(B, H, W, C)
    if (H % 2 == 1) or (W % 2 == 1):
        xg = jnp.pad(xg, ((0, 0), (0, H % 2), (0, W % 2), (0, 0)))
    x0 = xg[:, 0::2, 0::2, :]
    x1 = xg[:, 1::2, 0::2, :]
    x2 = xg[:, 0::2, 1::2, :]
    x3 = xg[:, 1::2, 1::2, :]
    m = jnp.concatenate([x0, x1, x2, x3], axis=-1).reshape(B, -1, 4 * C)
    m = m.astype(jnp.float32)
    mu = jnp.mean(m, axis=-1, keepdims=True)
    var = jnp.mean((m - mu) ** 2, axis=-1, keepdims=True)
    mn = (m - mu) / jnp.sqrt(var + LN_EPS) * gamma + beta
    return mn @ w_t


if __name__ == "__main__":
    # Small shapes consistent with the module: dim=32, B=2, H=W=16.
    B, H, W, dim = 2, 16, 16, 32

    key = jax.random.PRNGKey(0)
    kx, kw, kg, kb = jax.random.split(key, 4)

    x = jax.random.normal(kx, (B, H * W, dim), dtype=jnp.float32)

    # Synthetic parameters (shapes from __init__):
    #   reduction: nn.Linear(4*dim, 2*dim, bias=False) -> weight (2*dim, 4*dim)
    #   norm:      nn.LayerNorm(4*dim)                 -> gamma/beta (4*dim,)
    w_torch = jax.random.normal(kw, (2 * dim, 4 * dim), dtype=jnp.float32) * 0.02
    w_t = w_torch.T                                    # (4*dim, 2*dim)
    gamma = 1.0 + 0.1 * jax.random.normal(kg, (4 * dim,), dtype=jnp.float32)
    beta = 0.1 * jax.random.normal(kb, (4 * dim,), dtype=jnp.float32)

    out = patch_merging(x, H, W, gamma, beta, w_t)
    out = jax.block_until_ready(out)

    ref = _reference(x, H, W, gamma, beta, w_t)
    assert out.shape == (B, (H // 2) * (W // 2), 2 * dim), out.shape
    assert jnp.allclose(out, ref, atol=1e-4, rtol=1e-4), float(
        jnp.max(jnp.abs(out - ref)))

    # Also exercise the odd-H/W padding path (7x7 -> 4x4 merged).
    Ho = Wo = 7
    xo = jax.random.normal(kx, (B, Ho * Wo, dim), dtype=jnp.float32)
    out_o = jax.block_until_ready(patch_merging(xo, Ho, Wo, gamma, beta, w_t))
    ref_o = _reference(xo, Ho, Wo, gamma, beta, w_t)
    assert out_o.shape == (B, 4 * 4, 2 * dim), out_o.shape
    assert jnp.allclose(out_o, ref_o, atol=1e-4, rtol=1e-4), float(
        jnp.max(jnp.abs(out_o - ref_o)))

    print("KERNEL_OK")
</pallas_src>

<mosaic_0001>
module attributes {stable_mosaic.version = 11 : i64} {
  func.func @_merge_ln_reduce_kernel(%arg0: i32, %arg1: memref<8x1x8x64xf32, #tpu.memory_space<vmem>>, %arg2: memref<8x1x8x64xf32, #tpu.memory_space<vmem>>, %arg3: memref<64x64xf32, #tpu.memory_space<vmem>>, %arg4: memref<64x64xf32, #tpu.memory_space<vmem>>, %arg5: memref<1x64xf32, #tpu.memory_space<vmem>>, %arg6: memref<64x64xf32, #tpu.memory_space<vmem>>) attributes {dimension_semantics = [#tpu.dimension_semantics<parallel>], iteration_bounds = array<i64: 2>, scalar_prefetch = 0 : i64, scratch_operands = 0 : i64, tpu.core_type = #tpu.core_type<tc>, window_params = [{transform_indices = @transform_0, window_bounds = array<i64: 8, 1, 8, 64>}, {transform_indices = @transform_1, window_bounds = array<i64: 8, 1, 8, 64>}, {pipeline_mode = #tpu.pipeline_mode<synchronous>, transform_indices = @transform_2, window_bounds = array<i64: 64, 64>}, {pipeline_mode = #tpu.pipeline_mode<synchronous>, transform_indices = @transform_3, window_bounds = array<i64: 64, 64>}, {pipeline_mode = #tpu.pipeline_mode<synchronous>, transform_indices = @transform_4, window_bounds = array<i64: 1, 64>}, {transform_indices = @transform_5, window_bounds = array<i64: 64, 64>}]} {
    %c0 = arith.constant 0 : index
    %c0_0 = arith.constant 0 : index
    %c0_1 = arith.constant 0 : index
    %c0_2 = arith.constant 0 : index
    %0 = vector.load %arg1[%c0, %c0_0, %c0_1, %c0_2] : memref<8x1x8x64xf32, #tpu.memory_space<vmem>>, vector<8x1x8x64xf32>
    %1 = vector.shape_cast %0 : vector<8x1x8x64xf32> to vector<8x8x64xf32>
    %2 = vector.shape_cast %1 : vector<8x8x64xf32> to vector<64x64xf32>
    %c0_3 = arith.constant 0 : index
    %c0_4 = arith.constant 0 : index
    %c0_5 = arith.constant 0 : index
    %c0_6 = arith.constant 0 : index
    %3 = vector.load %arg2[%c0_3, %c0_4, %c0_5, %c0_6] : memref<8x1x8x64xf32, #tpu.memory_space<vmem>>, vector<8x1x8x64xf32>
    %4 = vector.shape_cast %3 : vector<8x1x8x64xf32> to vector<8x8x64xf32>
    %5 = vector.shape_cast %4 : vector<8x8x64xf32> to vector<64x64xf32>
    %cst = arith.constant dense<0.000000e+00> : vector<64xf32>
    %6 = vector.multi_reduction <add>, %2, %cst [1] : vector<64x64xf32> to vector<64xf32>
    %7 = vector.shape_cast %6 : vector<64xf32> to vector<64x1xf32>
    %cst_7 = arith.constant dense<0.000000e+00> : vector<64xf32>
    %8 = vector.multi_reduction <add>, %5, %cst_7 [1] : vector<64x64xf32> to vector<64xf32>
    %9 = vector.shape_cast %8 : vector<64xf32> to vector<64x1xf32>
    %10 = arith.addf %7, %9 : vector<64x1xf32>
    %11 = arith.mulf %2, %2 : vector<64x64xf32>
    %cst_8 = arith.constant dense<0.000000e+00> : vector<64xf32>
    %12 = vector.multi_reduction <add>, %11, %cst_8 [1] : vector<64x64xf32> to vector<64xf32>
    %13 = vector.shape_cast %12 : vector<64xf32> to vector<64x1xf32>
    %14 = arith.mulf %5, %5 : vector<64x64xf32>
    %cst_9 = arith.constant dense<0.000000e+00> : vector<64xf32>
    %15 = vector.multi_reduction <add>, %14, %cst_9 [1] : vector<64x64xf32> to vector<64xf32>
    %16 = vector.shape_cast %15 : vector<64xf32> to vector<64x1xf32>
    %17 = arith.addf %13, %16 : vector<64x1xf32>
    %cst_10 = arith.constant 7.812500e-03 : f32
    %18 = vector.broadcast %cst_10 : f32 to vector<64x1xf32>
    %19 = arith.mulf %10, %18 : vector<64x1xf32>
    %cst_11 = arith.constant 7.812500e-03 : f32
    %20 = vector.broadcast %cst_11 : f32 to vector<64x1xf32>
    %21 = arith.mulf %17, %20 : vector<64x1xf32>
    %22 = arith.mulf %19, %19 : vector<64x1xf32>
    %23 = arith.subf %21, %22 : vector<64x1xf32>
    %cst_12 = arith.constant 0.000000e+00 : f32
    %24 = vector.broadcast %cst_12 : f32 to vector<64x1xf32>
    %25 = arith.maximumf %23, %24 : vector<64x1xf32>
    %cst_13 = arith.constant 9.99999974E-6 : f32
    %26 = vector.broadcast %cst_13 : f32 to vector<64x1xf32>
    %27 = arith.addf %25, %26 : vector<64x1xf32>
    %28 = math.rsqrt %27 : vector<64x1xf32>
    %29 = vector.broadcast %19 : vector<64x1xf32> to vector<64x64xf32>
    %30 = arith.subf %2, %29 : vector<64x64xf32>
    %31 = vector.broadcast %19 : vector<64x1xf32> to vector<64x64xf32>
    %32 = arith.subf %5, %31 : vector<64x64xf32>
    %c0_14 = arith.constant 0 : index
    %c0_15 = arith.constant 0 : index
    %33 = vector.load %arg3[%c0_14, %c0_15] : memref<64x64xf32, #tpu.memory_space<vmem>>, vector<64x64xf32>
    %cst_16 = arith.constant dense<0.000000e+00> : vector<64x64xf32>
    %34 = tpu.matmul %30, %33, %cst_16 {dimension_numbers = #tpu.dot_dimension_numbers<[1], [0], [0], [1], [0, 0, 1, 1], [], []>} : vector<64x64xf32>, vector<64x64xf32>, vector<64x64xf32> -> vector<64x64xf32>
    %c0_17 = arith.constant 0 : index
    %c0_18 = arith.constant 0 : index
    %35 = vector.load %arg4[%c0_17, %c0_18] : memref<64x64xf32, #tpu.memory_space<vmem>>, vector<64x64xf32>
    %cst_19 = arith.constant dense<0.000000e+00> : vector<64x64xf32>
    %36 = tpu.matmul %32, %35, %cst_19 {dimension_numbers = #tpu.dot_dimension_numbers<[1], [0], [0], [1], [0, 0, 1, 1], [], []>} : vector<64x64xf32>, vector<64x64xf32>, vector<64x64xf32> -> vector<64x64xf32>
    %37 = arith.addf %34, %36 : vector<64x64xf32>
    %38 = vector.broadcast %28 : vector<64x1xf32> to vector<64x64xf32>
    %39 = arith.mulf %37, %38 : vector<64x64xf32>
    %c0_20 = arith.constant 0 : index
    %c0_21 = arith.constant 0 : index
    %40 = vector.load %arg5[%c0_20, %c0_21] : memref<1x64xf32, #tpu.memory_space<vmem>>, vector<1x64xf32>
    %41 = vector.broadcast %40 : vector<1x64xf32> to vector<64x64xf32>
    %42 = arith.addf %39, %41 : vector<64x64xf32>
    %c0_22 = arith.constant 0 : index
    %c0_23 = arith.constant 0 : index
    %43 = vector.load %arg6[%c0_22, %c0_23] : memref<64x64xf32, #tpu.memory_space<vmem>>, vector<64x64xf32>
    tpu.vector_store %arg6[%c0_22, %c0_23], %42 {strides = array<i32>} : memref<64x64xf32, #tpu.memory_space<vmem>>, vector<64x64xf32>,
    return
  }
  func.func @transform_0(%arg0: i32) -> (i32, i32, i32, i32) {
    %c0_i32 = arith.constant 0 : i32
    %c0_i32_0 = arith.constant 0 : i32
    %c0_i32_1 = arith.constant 0 : i32
    %c0_i32_2 = arith.constant 0 : i32
    return %arg0, %c0_i32, %c0_i32_0, %c0_i32_1 : i32, i32, i32, i32
  }
  func.func @transform_1(%arg0: i32) -> (i32, i32, i32, i32) {
    %c1_i32 = arith.constant 1 : i32
    %c0_i32 = arith.constant 0 : i32
    %c0_i32_0 = arith.constant 0 : i32
    %c0_i32_1 = arith.constant 0 : i32
    return %arg0, %c1_i32, %c0_i32, %c0_i32_0 : i32, i32, i32, i32
  }
  func.func @transform_2(%arg0: i32) -> (i32, i32) {
    %c0_i32 = arith.constant 0 : i32
    %c0_i32_0 = arith.constant 0 : i32
    %c0_i32_1 = arith.constant 0 : i32
    return %c0_i32, %c0_i32_0 : i32, i32
  }
  func.func @transform_3(%arg0: i32) -> (i32, i32) {
    %c0_i32 = arith.constant 0 : i32
    %c0_i32_0 = arith.constant 0 : i32
    %c0_i32_1 = arith.constant 0 : i32
    return %c0_i32, %c0_i32_0 : i32, i32
  }
  func.func @transform_4(%arg0: i32) -> (i32, i32) {
    %c0_i32 = arith.constant 0 : i32
    %c0_i32_0 = arith.constant 0 : i32
    %c0_i32_1 = arith.constant 0 : i32
    return %c0_i32, %c0_i32_0 : i32, i32
  }
  func.func @transform_5(%arg0: i32) -> (i32, i32) {
    %c0_i32 = arith.constant 0 : i32
    %c0_i32_0 = arith.constant 0 : i32
    return %arg0, %c0_i32 : i32, i32
  }
}

</mosaic_0001>

<llo_original>
// kernel: patch_merging.1
$region0: #{patch_merging.1}
  #allocation0 [shape = 'u32[]', space=smem, size = 0x4, offset = 0x4, fixed_abs, tag = 'smem constant byte address 0x4 - core index']
  #allocation1 [shape = 'u32[144,128]{1,0:T(1,128)}', space=vmem, size = 0x12000, scoped, tag = 'internal scratch']
  %s0 = inlined_call_operand.vmem [shape: f32[16,2,8,64], index: 0, kind: input, shape index: {}, may-alias: {0,1}]
  %s1 = inlined_call_operand.vmem [shape: f32[16,2,8,64], index: 1, kind: input, shape index: {}, may-alias: {0,1}]
  %s2 = inlined_call_operand.vmem [shape: f32[64,64], index: 2, kind: input, shape index: {}]
  %s3 = inlined_call_operand.vmem [shape: f32[64,64], index: 3, kind: input, shape index: {}]
  %s4 = inlined_call_operand.vmem [shape: f32[1,64], index: 4, kind: input, shape index: {}]
  %s5 = inlined_call_operand.hbm [shape: f32[128,64], index: 5, kind: output, shape index: {}]
  %s6 = sld [smem:[#allocation0]]
  $region129: #{patch_merging.1} parent=0
    _
  %s8 = ssub.s32 1, %s6
  %s9 = scalar_select 0, %s8, %s6
  $region1: #{patch_merging.1} parent=0
    #allocation2 [shape = 'u8[65536]{0}', space=vmem, size = 0x10000, scoped, tag = 'input window, operand 0']
    #allocation3 [shape = 'u8[65536]{0}', space=vmem, size = 0x10000, scoped, tag = 'input window, operand 1']
    #allocation4 [shape = 'u8[65536]{0}', space=vmem, size = 0x10000, scoped, tag = 'output window, operand 0']
    #allocation5 [shape = 's32[2]{0}', space=sflag, size = 0x8, scoped, tag = 'scoped memory for patch_merging.1']
    %10 = vsyncpa [#allocation5], 0
    %s11 = scalar_lea.sflag [#allocation5], 1
    %12 = vsyncpa %s11, 0
    loop: start=0, step=1, limit=4
    $region2: #{patch_merging.1} parent=1 // loop_pre_header
      _
    $region3: #{patch_merging.1} parent=1 // loop_header
      %s14 = sphi 0, %s18
      %p15 = scmp.ge.s32.totalorder %s14, 4
      %s24 = sphi 0, %s26
      %s27 = sphi 0, %s24
      %s28 = sphi 0, %s27
      %s44 = sphi 0, %s28
      %s50 = sphi 0, %s52
      %s53 = sphi 0, %s50
      %s54 = sphi 0, %s53
      %s70 = sphi 0, %s54
      %s74 = sphi 0, %s74
      %s76 = sphi 0, %s74
      %s77 = sphi 0, %s76
      %s91 = sphi 0, %s77
      %s95 = sphi 0, %s95
      %s97 = sphi 0, %s95
      %s98 = sphi 0, %s97
      %s112 = sphi 0, %s98
      %s116 = sphi 0, %s116
      %s118 = sphi 0, %s116
      %s119 = sphi 0, %s118
      %s133 = sphi 0, %s119
      %s139 = sphi 0, %s141
      %s142 = sphi 0, %s139
      %s143 = sphi 0, %s142
      %s159 = sphi 0, %s143
    $region4: #{patch_merging.1} parent=1 // loop_header_branch
      %17 = sbr.rel (%p15) target = $region8
    $region5: #{patch_merging.1} parent=1 // loop_body
      %s19 = ssub.s32 %s14, 1
      %s20 = ssub.s32 %s14, 2
      %s21 = sadd.s32 %s14, 1
      %s22 = ssub.s32 %s14, %s21
      %p23 = scmp.eq.s32.totalorder %s22, 0
      %s25 = sadd.s32 %s24, 1
      %s26 = scalar_select %p23, %s24, %s25
      %p29 = pneg %p23
      %p30 = scmp.eq.s32.totalorder %s14, 1
      %p31 = por %p29, %p30
      %p32 = scmp.ne.s32.totalorder %s24, %s27
      %p33 = scmp.eq.s32.totalorder %s14, 0
      %p34 = por %p32, %p33
      %p35 = scmp.ne.s32.totalorder %s24, %s27
      %p36 = scmp.eq.s32.totalorder %s19, 1
      %p37 = por %p35, %p36
      %p38 = scmp.ne.s32.totalorder %s27, %s28
      %p39 = scmp.eq.s32.totalorder %s19, 0
      %p40 = por %p38, %p39
      %p41 = scmp.ne.s32.totalorder %s27, %s28
      %p42 = scmp.eq.s32.totalorder %s20, 1
      %p43 = por %p41, %p42
      %p45 = scmp.ne.s32.totalorder %s28, %s44
      %p46 = scmp.eq.s32.totalorder %s20, 0
      %p47 = por %p45, %p46
      %s48 = ssub.s32 %s14, %s21
      %p49 = scmp.eq.s32.totalorder %s48, 0
      %s51 = sadd.s32 %s50, 1
      %s52 = scalar_select %p49, %s50, %s51
      %p55 = pneg %p49
      %p56 = scmp.eq.s32.totalorder %s14, 1
      %p57 = por %p55, %p56
      %p58 = scmp.ne.s32.totalorder %s50, %s53
      %p59 = scmp.eq.s32.totalorder %s14, 0
      %p60 = por %p58, %p59
      %p61 = scmp.ne.s32.totalorder %s50, %s53
      %p62 = scmp.eq.s32.totalorder %s19, 1
      %p63 = por %p61, %p62
      %p64 = scmp.ne.s32.totalorder %s53, %s54
      %p65 = scmp.eq.s32.totalorder %s19, 0
      %p66 = por %p64, %p65
      %p67 = scmp.ne.s32.totalorder %s53, %s54
      %p68 = scmp.eq.s32.totalorder %s20, 1
      %p69 = por %p67, %p68
      %p71 = scmp.ne.s32.totalorder %s54, %s70
      %p72 = scmp.eq.s32.totalorder %s20, 0
      %p73 = por %p71, %p72
      %s75 = sadd.s32 %s74, 1
      %p78 = scmp.eq.s32.totalorder %s14, 1
      %p79 = scmp.ne.s32.totalorder %s74, %s76
      %p80 = scmp.eq.s32.totalorder %s14, 0
      %p81 = por %p79, %p80
      %p82 = scmp.ne.s32.totalorder %s74, %s76
      %p83 = scmp.eq.s32.totalorder %s19, 1
      %p84 = por %p82, %p83
      %p85 = scmp.ne.s32.totalorder %s76, %s77
      %p86 = scmp.eq.s32.totalorder %s19, 0
      %p87 = por %p85, %p86
      %p88 = scmp.ne.s32.totalorder %s76, %s77
      %p89 = scmp.eq.s32.totalorder %s20, 1
      %p90 = por %p88, %p89
      %p92 = scmp.ne.s32.totalorder %s77, %s91
      %p93 = scmp.eq.s32.totalorder %s20, 0
      %p94 = por %p92, %p93
      %s96 = sadd.s32 %s95, 1
      %p99 = scmp.eq.s32.totalorder %s14, 1
      %p100 = scmp.ne.s32.totalorder %s95, %s97
      %p101 = scmp.eq.s32.totalorder %s14, 0
      %p102 = por %p100, %p101
      %p103 = scmp.ne.s32.totalorder %s95, %s97
      %p104 = scmp.eq.s32.totalorder %s19, 1
      %p105 = por %p103, %p104
      %p106 = scmp.ne.s32.totalorder %s97, %s98
      %p107 = scmp.eq.s32.totalorder %s19, 0
      %p108 = por %p106, %p107
      %p109 = scmp.ne.s32.totalorder %s97, %s98
      %p110 = scmp.eq.s32.totalorder %s20, 1
      %p111 = por %p109, %p110
      %p113 = scmp.ne.s32.totalorder %s98, %s112
      %p114 = scmp.eq.s32.totalorder %s20, 0
      %p115 = por %p113, %p114
      %s117 = sadd.s32 %s116, 1
      %p120 = scmp.eq.s32.totalorder %s14, 1
      %p121 = scmp.ne.s32.totalorder %s116, %s118
      %p122 = scmp.eq.s32.totalorder %s14, 0
      %p123 = por %p121, %p122
      %p124 = scmp.ne.s32.totalorder %s116, %s118
      %p125 = scmp.eq.s32.totalorder %s19, 1
      %p126 = por %p124, %p125
      %p127 = scmp.ne.s32.totalorder %s118, %s119
      %p128 = scmp.eq.s32.totalorder %s19, 0
      %p129 = por %p127, %p128
      %p130 = scmp.ne.s32.totalorder %s118, %s119
      %p131 = scmp.eq.s32.totalorder %s20, 1
      %p132 = por %p130, %p131
      %p134 = scmp.ne.s32.totalorder %s119, %s133
      %p135 = scmp.eq.s32.totalorder %s20, 0
      %p136 = por %p134, %p135
      %s137 = ssub.s32 %s14, %s21
      %p138 = scmp.eq.s32.totalorder %s137, 0
      %s140 = sadd.s32 %s139, 1
      %s141 = scalar_select %p138, %s139, %s140
      %p144 = pneg %p138
      %p145 = scmp.eq.s32.totalorder %s14, 1
      %p146 = por %p144, %p145
      %p147 = scmp.ne.s32.totalorder %s139, %s142
      %p148 = scmp.eq.s32.totalorder %s14, 0
      %p149 = por %p147, %p148
      %p150 = scmp.ne.s32.totalorder %s139, %s142
      %p151 = scmp.eq.s32.totalorder %s19, 1
      %p152 = por %p150, %p151
      %p153 = scmp.ne.s32.totalorder %s142, %s143
      %p154 = scmp.eq.s32.totalorder %s19, 0
      %p155 = por %p153, %p154
      %p156 = scmp.ne.s32.totalorder %s142, %s143
      %p157 = scmp.eq.s32.totalorder %s20, 1
      %p158 = por %p156, %p157
      %p160 = scmp.ne.s32.totalorder %s143, %s159
      %p161 = scmp.eq.s32.totalorder %s20, 0
      %p162 = por %p160, %p161
      %p163 = scmp.le.s32.totalorder 1, %s14
      %p164 = scmp.lt.s32.totalorder %s14, 3
      %p165 = pnand %p163, %p164
      %p166 = pneg %p165
      // Predicated region
      $region9: #{patch_merging.1} parent=5 // pred_check
        _
      $region10: #{patch_merging.1} parent=5 // pred_check_branch
        %168 = sbr.rel (%p165) target = $region12
      $region11: #{patch_merging.1} parent=5 // pred_region
        %s169 = ssub.s32 %s14, 1
        // Predicated region
        $region13: #{patch_merging.1} parent=11 // pred_check
          %p170 = pneg %p87
        $region14: #{patch_merging.1} parent=11 // pred_check_branch
          %172 = sbr.rel (%p170) target = $region16
        $region15: #{patch_merging.1} parent=11 // pred_region
          _
        $region16: #{patch_merging.1} parent=11 // pred_fallthru
          _
        // Predicated region
        $region17: #{patch_merging.1} parent=11 // pred_check
          %p173 = pneg %p108
        $region18: #{patch_merging.1} parent=11 // pred_check_branch
          %175 = sbr.rel (%p173) target = $region20
        $region19: #{patch_merging.1} parent=11 // pred_region
          _
        $region20: #{patch_merging.1} parent=11 // pred_fallthru
          _
        // Predicated region
        $region21: #{patch_merging.1} parent=11 // pred_check
          %p176 = pneg %p129
        $region22: #{patch_merging.1} parent=11 // pred_check_branch
          %178 = sbr.rel (%p176) target = $region24
        $region23: #{patch_merging.1} parent=11 // pred_region
          _
        $region24: #{patch_merging.1} parent=11 // pred_fallthru
          _
      $region12: #{patch_merging.1} parent=5 // pred_fallthru
        _
      %p179 = scmp.lt.s32.totalorder %s14, 2
      // Predicated region
      $region25: #{patch_merging.1} parent=5 // pred_check
        %p180 = pneg %p179
      $region26: #{patch_merging.1} parent=5 // pred_check_branch
        %182 = sbr.rel (%p180) target = $region28
      $region27: #{patch_merging.1} parent=5 // pred_region
        // Predicated region
        $region29: #{patch_merging.1} parent=27 // pred_check
          %p183 = pneg %p34
        $region30: #{patch_merging.1} parent=27 // pred_check_branch
          %185 = sbr.rel (%p183) target = $region32
        $region31: #{patch_merging.1} parent=27 // pred_region
          %s186 = sand.u32 %s24, 1
          %s187 = sand.u32 %s24, 1
          %s188 = smul.addr %s187, 64
          %s189 = scalar_lea.vmem [#allocation2], %s188
          %s190 = smul.u32 8, %s14
          %s191 = smul.addr %s190, 2
          %s192 = smul.addr %s191, 8
          %s193 = scalar_lea.vmem %s0, %s192
          // Predicated region
          $region33: #{patch_merging.1} parent=31 // pred_check
            _
          $region34: #{patch_merging.1} parent=31 // pred_check_branch
            %195 = sbr.rel (0) target = $region36
          $region35: #{patch_merging.1} parent=31 // pred_region
            // Predicated region
            $region37: #{patch_merging.1} parent=35 // pred_check
              _
            $region38: #{patch_merging.1} parent=35 // pred_check_branch
              %197 = sbr.rel (0) target = $region40
            $region39: #{patch_merging.1} parent=35 // pred_region
              // Predicated region
              $region52: #{patch_merging.1} parent=39 // pred_check
                _
              $region53: #{patch_merging.1} parent=39 // pred_check_branch
                %227 = sbr.rel (0) target = $region55
              $region54: #{patch_merging.1} parent=39 // pred_region
                loop: start=0, step=1, limit=1
                $region56: #{patch_merging.1} parent=54 // loop_pre_header
                  _
                $region57: #{patch_merging.1} parent=54 // loop_header
                  %s229 = sphi 0, %s233
                  %p230 = scmp.ge.s32.totalorder %s229, 1
                  %s234 = sphi %s193, %s193
                  %s235 = sphi %s189, %s189
                $region58: #{patch_merging.1} parent=54 // loop_header_branch
                  %232 = sbr.rel (%p230) target = $region62
                $region59: #{patch_merging.1} parent=54 // loop_body
                  %v236 = vld [vmem:[%s234] sm:$0xff]
                  %237 = vst [vmem:[%s235] sm:$0xff] %v236
                  %v238 = vld [vmem:[%s234 + $0x10] sm:$0xff]
                  %239 = vst [vmem:[%s235 + $0x8] sm:$0xff] %v238
                  %v240 = vld [vmem:[%s234 + $0x20] sm:$0xff]
                  %241 = vst [vmem:[%s235 + $0x10] sm:$0xff] %v240
                  %v242 = vld [vmem:[%s234 + $0x30] sm:$0xff]
                  %243 = vst [vmem:[%s235 + $0x18] sm:$0xff] %v242
                  %v244 = vld [vmem:[%s234 + $0x40] sm:$0xff]
                  %245 = vst [vmem:[%s235 + $0x20] sm:$0xff] %v244
                  %v246 = vld [vmem:[%s234 + $0x50] sm:$0xff]
                  %247 = vst [vmem:[%s235 + $0x28] sm:$0xff] %v246
                  %v248 = vld [vmem:[%s234 + $0x60] sm:$0xff]
                  %249 = vst [vmem:[%s235 + $0x30] sm:$0xff] %v248
                  %v250 = vld [vmem:[%s234 + $0x70] sm:$0xff]
                  %251 = vst [vmem:[%s235 + $0x38] sm:$0xff] %v250
                $region60: #{patch_merging.1} parent=54 // loop_footer
                  %s233 = sadd.s32 1, %s229
                $region61: #{patch_merging.1} parent=54 // loop_footer_branch
                  %228 = sbr.rel target = $region57
                $region62: #{patch_merging.1} parent=54 // loop_exit
                  _
              $region55: #{patch_merging.1} parent=39 // pred_fallthru
                _
              // Predicated region
              $region63: #{patch_merging.1} parent=39 // pred_check
                _
              $region64: #{patch_merging.1} parent=39 // pred_check_branch
                %253 = sbr.rel target = $region66
              $region65: #{patch_merging.1} parent=39 // pred_region
                _
              $region66: #{patch_merging.1} parent=39 // pred_fallthru
                _
            $region40: #{patch_merging.1} parent=35 // pred_fallthru
              _
            // Predicated region
            $region41: #{patch_merging.1} parent=35 // pred_check
              _
            $region42: #{patch_merging.1} parent=35 // pred_check_branch
              %199 = sbr.rel target = $region44
            $region43: #{patch_merging.1} parent=35 // pred_region
              %s201 = ssub.s32 256, 1
              loop: start=0, step=1, limit=1
              $region45: #{patch_merging.1} parent=43 // loop_pre_header
                _
              $region46: #{patch_merging.1} parent=43 // loop_header
                %s203 = sphi 0, %s207
                %p204 = scmp.ge.s32.totalorder %s203, 1
                %s208 = sphi %s193, %s193
                %s209 = sphi %s189, %s189
              $region47: #{patch_merging.1} parent=43 // loop_header_branch
                %206 = sbr.rel (%p204) target = $region51
              $region48: #{patch_merging.1} parent=43 // loop_body
                %v210 = vld [vmem:[%s208] sm:%s201]
                %211 = vst [vmem:[%s209] sm:%s201] %v210
                %v212 = vld [vmem:[%s208 + $0x10] sm:%s201]
                %213 = vst [vmem:[%s209 + $0x8] sm:%s201] %v212
                %v214 = vld [vmem:[%s208 + $0x20] sm:%s201]
                %215 = vst [vmem:[%s209 + $0x10] sm:%s201] %v214
                %v216 = vld [vmem:[%s208 + $0x30] sm:%s201]
                %217 = vst [vmem:[%s209 + $0x18] sm:%s201] %v216
                %v218 = vld [vmem:[%s208 + $0x40] sm:%s201]
                %219 = vst [vmem:[%s209 + $0x20] sm:%s201] %v218
                %v220 = vld [vmem:[%s208 + $0x50] sm:%s201]
                %221 = vst [vmem:[%s209 + $0x28] sm:%s201] %v220
                %v222 = vld [vmem:[%s208 + $0x60] sm:%s201]
                %223 = vst [vmem:[%s209 + $0x30] sm:%s201] %v222
                %v224 = vld [vmem:[%s208 + $0x70] sm:%s201]
                %225 = vst [vmem:[%s209 + $0x38] sm:%s201] %v224
              $region49: #{patch_merging.1} parent=43 // loop_footer
                %s207 = sadd.s32 1, %s203
              $region50: #{patch_merging.1} parent=43 // loop_footer_branch
                %202 = sbr.rel target = $region46
              $region51: #{patch_merging.1} parent=43 // loop_exit
                _
            $region44: #{patch_merging.1} parent=35 // pred_fallthru
              _
          $region36: #{patch_merging.1} parent=31 // pred_fallthru
            _
          %254 = vnop
        $region32: #{patch_merging.1} parent=27 // pred_fallthru
          _
        // Predicated region
        $region67: #{patch_merging.1} parent=27 // pred_check
          %p255 = pneg %p60
        $region68: #{patch_merging.1} parent=27 // pred_check_branch
          %257 = sbr.rel (%p255) target = $region70
        $region69: #{patch_merging.1} parent=27 // pred_region
          %s258 = sand.u32 %s50, 1
          %s259 = sand.u32 %s50, 1
          %s260 = smul.addr %s259, 64
          %s261 = scalar_lea.vmem [#allocation3], %s260
          %s262 = smul.u32 8, %s14
          %s263 = smul.addr %s262, 2
          %s264 = sadd.s32 1, %s263
          %s265 = smul.addr %s264, 8
          %s266 = scalar_lea.vmem %s1, %s265
          // Predicated region
          $region71: #{patch_merging.1} parent=69 // pred_check
            _
          $region72: #{patch_merging.1} parent=69 // pred_check_branch
            %268 = sbr.rel (0) target = $region74
          $region73: #{patch_merging.1} parent=69 // pred_region
            // Predicated region
            $region75: #{patch_merging.1} parent=73 // pred_check
              _
            $region76: #{patch_merging.1} parent=73 // pred_check_branch
              %270 = sbr.rel (0) target = $region78
            $region77: #{patch_merging.1} parent=73 // pred_region
              // Predicated region
              $region90: #{patch_merging.1} parent=77 // pred_check
                _
              $region91: #{patch_merging.1} parent=77 // pred_check_branch
                %300 = sbr.rel (0) target = $region93
              $region92: #{patch_merging.1} parent=77 // pred_region
                loop: start=0, step=1, limit=1
                $region94: #{patch_merging.1} parent=92 // loop_pre_header
                  _
                $region95: #{patch_merging.1} parent=92 // loop_header
                  %s302 = sphi 0, %s306
                  %p303 = scmp.ge.s32.totalorder %s302, 1
                  %s307 = sphi %s266, %s266
                  %s308 = sphi %s261, %s261
                $region96: #{patch_merging.1} parent=92 // loop_header_branch
                  %305 = sbr.rel (%p303) target = $region100
                $region97: #{patch_merging.1} parent=92 // loop_body
                  %v309 = vld [vmem:[%s307] sm:$0xff]
                  %310 = vst [vmem:[%s308] sm:$0xff] %v309
                  %v311 = vld [vmem:[%s307 + $0x10] sm:$0xff]
                  %312 = vst [vmem:[%s308 + $0x8] sm:$0xff] %v311
                  %v313 = vld [vmem:[%s307 + $0x20] sm:$0xff]
                  %314 = vst [vmem:[%s308 + $0x10] sm:$0xff] %v313
                  %v315 = vld [vmem:[%s307 + $0x30] sm:$0xff]
                  %316 = vst [vmem:[%s308 + $0x18] sm:$0xff] %v315
                  %v317 = vld [vmem:[%s307 + $0x40] sm:$0xff]
                  %318 = vst [vmem:[%s308 + $0x20] sm:$0xff] %v317
                  %v319 = vld [vmem:[%s307 + $0x50] sm:$0xff]
                  %320 = vst [vmem:[%s308 + $0x28] sm:$0xff] %v319
                  %v321 = vld [vmem:[%s307 + $0x60] sm:$0xff]
                  %322 = vst [vmem:[%s308 + $0x30] sm:$0xff] %v321
                  %v323 = vld [vmem:[%s307 + $0x70] sm:$0xff]
                  %324 = vst [vmem:[%s308 + $0x38] sm:$0xff] %v323
                $region98: #{patch_merging.1} parent=92 // loop_footer
                  %s306 = sadd.s32 1, %s302
                $region99: #{patch_merging.1} parent=92 // loop_footer_branch
                  %301 = sbr.rel target = $region95
                $region100: #{patch_merging.1} parent=92 // loop_exit
                  _
              $region93: #{patch_merging.1} parent=77 // pred_fallthru
                _
              // Predicated region
              $region101: #{patch_merging.1} parent=77 // pred_check
                _
              $region102: #{patch_merging.1} parent=77 // pred_check_branch
                %326 = sbr.rel target = $region104
              $region103: #{patch_merging.1} parent=77 // pred_region
                _
              $region104: #{patch_merging.1} parent=77 // pred_fallthru
                _
            $region78: #{patch_merging.1} parent=73 // pred_fallthru
              _
            // Predicated region
            $region79: #{patch_merging.1} parent=73 // pred_check
              _
            $region80: #{patch_merging.1} parent=73 // pred_check_branch
              %272 = sbr.rel target = $region82
            $region81: #{patch_merging.1} parent=73 // pred_region
              %s274 = ssub.s32 256, 1
              loop: start=0, step=1, limit=1
              $region83: #{patch_merging.1} parent=81 // loop_pre_header
                _
              $region84: #{patch_merging.1} parent=81 // loop_header
                %s276 = sphi 0, %s280
                %p277 = scmp.ge.s32.totalorder %s276, 1
                %s281 = sphi %s266, %s266
                %s282 = sphi %s261, %s261
              $region85: #{patch_merging.1} parent=81 // loop_header_branch
                %279 = sbr.rel (%p277) target = $region89
              $region86: #{patch_merging.1} parent=81 // loop_body
                %v283 = vld [vmem:[%s281] sm:%s274]
                %284 = vst [vmem:[%s282] sm:%s274] %v283
                %v285 = vld [vmem:[%s281 + $0x10] sm:%s274]
                %286 = vst [vmem:[%s282 + $0x8] sm:%s274] %v285
                %v287 = vld [vmem:[%s281 + $0x20] sm:%s274]
                %288 = vst [vmem:[%s282 + $0x10] sm:%s274] %v287
                %v289 = vld [vmem:[%s281 + $0x30] sm:%s274]
                %290 = vst [vmem:[%s282 + $0x18] sm:%s274] %v289
                %v291 = vld [vmem:[%s281 + $0x40] sm:%s274]
                %292 = vst [vmem:[%s282 + $0x20] sm:%s274] %v291
                %v293 = vld [vmem:[%s281 + $0x50] sm:%s274]
                %294 = vst [vmem:[%s282 + $0x28] sm:%s274] %v293
                %v295 = vld [vmem:[%s281 + $0x60] sm:%s274]
                %296 = vst [vmem:[%s282 + $0x30] sm:%s274] %v295
                %v297 = vld [vmem:[%s281 + $0x70] sm:%s274]
                %298 = vst [vmem:[%s282 + $0x38] sm:%s274] %v297
              $region87: #{patch_merging.1} parent=81 // loop_footer
                %s280 = sadd.s32 1, %s276
              $region88: #{patch_merging.1} parent=81 // loop_footer_branch
                %275 = sbr.rel target = $region84
              $region89: #{patch_merging.1} parent=81 // loop_exit
                _
            $region82: #{patch_merging.1} parent=73 // pred_fallthru
              _
          $region74: #{patch_merging.1} parent=69 // pred_fallthru
            _
          %327 = vnop
        $region70: #{patch_merging.1} parent=27 // pred_fallthru
          _
      $region28: #{patch_merging.1} parent=5 // pred_fallthru
        _
      %p328 = scmp.le.s32.totalorder 1, %s14
      %p329 = scmp.lt.s32.totalorder %s14, 3
      %p330 = pnand %p328, %p329
      %p331 = pneg %p330
      // Predicated region
      $region105: #{patch_merging.1} parent=5 // pred_check
        _
      $region106: #{patch_merging.1} parent=5 // pred_check_branch
        %333 = sbr.rel (%p330) target = $region108
      $region107: #{patch_merging.1} parent=5 // pred_region
        %s334 = ssub.s32 %s14, 1
        %s335 = sand.u32 %s27, 1
        %s336 = sand.u32 %s27, 1
        %s337 = smul.addr %s336, 64
        %s338 = scalar_lea.vmem [#allocation2], %s337
        // Predicated region
        $region109: #{patch_merging.1} parent=107 // pred_check
          %p339 = pneg %p40
        $region110: #{patch_merging.1} parent=107 // pred_check_branch
          %341 = sbr.rel (%p339) target = $region112
        $region111: #{patch_merging.1} parent=107 // pred_region
          _
        $region112: #{patch_merging.1} parent=107 // pred_fallthru
          _
        %s342 = sand.u32 %s53, 1
        %s343 = sand.u32 %s53, 1
        %s344 = smul.addr %s343, 64
        %s345 = scalar_lea.vmem [#allocation3], %s344
        // Predicated region
        $region113: #{patch_merging.1} parent=107 // pred_check
          %p346 = pneg %p66
        $region114: #{patch_merging.1} parent=107 // pred_check_branch
          %348 = sbr.rel (%p346) target = $region116
        $region115: #{patch_merging.1} parent=107 // pred_region
          _
        $region116: #{patch_merging.1} parent=107 // pred_fallthru
          _
        %s349 = sand.u32 %s27, 1
        %s350 = sand.u32 %s27, 1
        %s351 = smul.addr %s350, 64
        %s352 = scalar_lea.vmem [#allocation2], %s351
        %p353 = pneg %p40
        %p354 = pneg %p37
        %s355 = sand.u32 %s53, 1
        %s356 = sand.u32 %s53, 1
        %s357 = smul.addr %s356, 64
        %s358 = scalar_lea.vmem [#allocation3], %s357
        %p359 = pneg %p66
        %p360 = pneg %p63
        %p361 = pneg %p87
        %p362 = pneg %p84
        %p363 = pneg %p108
        %p364 = pneg %p105
        %p365 = pneg %p129
        %p366 = pneg %p126
        %p367 = pneg %p155
        %p368 = pneg %p152
        %s369 = sand.u32 %s142, 1
        %s370 = scalar_lea.sflag [#allocation5], %s369
        %s371 = sand.u32 %s142, 1
        %s372 = smul.addr %s371, 64
        %s373 = scalar_lea.vmem [#allocation4], %s372
        %s374 = smul.u32 8, %s19
        %s375 = smul.u32 8, %s19
        %s376 = smul.u32 8, %s19
        %v377 = vld [vmem:[%s338] sm:$0xff]
        %v378 = vld [vmem:[%s338 + $0x8] sm:$0xff]
        %v379 = vld [vmem:[%s338 + $0x10] sm:$0xff]
        %v380 = vld [vmem:[%s338 + $0x18] sm:$0xff]
        %v381 = vld [vmem:[%s338 + $0x20] sm:$0xff]
        %v382 = vld [vmem:[%s338 + $0x28] sm:$0xff]
        %v383 = vld [vmem:[%s338 + $0x30] sm:$0xff]
        %v384 = vld [vmem:[%s338 + $0x38] sm:$0xff]
        %v385 = vld [vmem:[%s345] sm:$0xff]
        %v386 = vld [vmem:[%s345 + $0x8] sm:$0xff]
        %v387 = vld [vmem:[%s345 + $0x10] sm:$0xff]
        %v388 = vld [vmem:[%s345 + $0x18] sm:$0xff]
        %v389 = vld [vmem:[%s345 + $0x20] sm:$0xff]
        %v390 = vld [vmem:[%s345 + $0x28] sm:$0xff]
        %v391 = vld [vmem:[%s345 + $0x30] sm:$0xff]
        %v392 = vld [vmem:[%s345 + $0x38] sm:$0xff]
        %vm393 = vcmask 523264
        %v394 = vsel %vm393, %v377, 0.0
        %395 = vadd.xlane.f32.xlu0 %v394
        %v396 = vpop.xlane.xlu0 %395
        %v397 = vsel %vm393, %v378, 0.0
        %398 = vadd.xlane.f32.xlu0 %v397
        %v399 = vpop.xlane.xlu0 %398
        %v400 = vsel %vm393, %v379, 0.0
        %401 = vadd.xlane.f32.xlu0 %v400
        %v402 = vpop.xlane.xlu0 %401
        %v403 = vsel %vm393, %v380, 0.0
        %404 = vadd.xlane.f32.xlu0 %v403
        %v405 = vpop.xlane.xlu0 %404
        %v406 = vsel %vm393, %v381, 0.0
        %407 = vadd.xlane.f32.xlu0 %v406
        %v408 = vpop.xlane.xlu0 %407
        %v409 = vsel %vm393, %v382, 0.0
        %410 = vadd.xlane.f32.xlu0 %v409
        %v411 = vpop.xlane.xlu0 %410
        %v412 = vsel %vm393, %v383, 0.0
        %413 = vadd.xlane.f32.xlu0 %v412
        %v414 = vpop.xlane.xlu0 %413
        %v415 = vsel %vm393, %v384, 0.0
        %416 = vadd.xlane.f32.xlu0 %v415
        %v417 = vpop.xlane.xlu0 %416
        %v418 = vsel %vm393, %v385, 0.0
        %419 = vadd.xlane.f32.xlu0 %v418
        %v420 = vpop.xlane.xlu0 %419
        %v421 = vsel %vm393, %v386, 0.0
        %422 = vadd.xlane.f32.xlu0 %v421
        %v423 = vpop.xlane.xlu0 %422
        %v424 = vsel %vm393, %v387, 0.0
        %425 = vadd.xlane.f32.xlu0 %v424
        %v426 = vpop.xlane.xlu0 %425
        %v427 = vsel %vm393, %v388, 0.0
        %428 = vadd.xlane.f32.xlu0 %v427
        %v429 = vpop.xlane.xlu0 %428
        %v430 = vsel %vm393, %v389, 0.0
        %431 = vadd.xlane.f32.xlu0 %v430
        %v432 = vpop.xlane.xlu0 %431
        %v433 = vsel %vm393, %v390, 0.0
        %434 = vadd.xlane.f32.xlu0 %v433
        %v435 = vpop.xlane.xlu0 %434
        %v436 = vsel %vm393, %v391, 0.0
        %437 = vadd.xlane.f32.xlu0 %v436
        %v438 = vpop.xlane.xlu0 %437
        %v439 = vsel %vm393, %v392, 0.0
        %440 = vadd.xlane.f32.xlu0 %v439
        %v441 = vpop.xlane.xlu0 %440
        %v442 = vadd.f32 %v396, %v420
        %v443 = vadd.f32 %v399, %v423
        %v444 = vadd.f32 %v402, %v426
        %v445 = vadd.f32 %v405, %v429
        %v446 = vadd.f32 %v408, %v432
        %v447 = vadd.f32 %v411, %v435
        %v448 = vadd.f32 %v414, %v438
        %v449 = vadd.f32 %v417, %v441
        %v450 = vmul.f32 %v377, %v377
        %v451 = vmul.f32 %v378, %v378
        %v452 = vmul.f32 %v379, %v379
        %v453 = vmul.f32 %v380, %v380
        %v454 = vmul.f32 %v381, %v381
        %v455 = vmul.f32 %v382, %v382
        %v456 = vmul.f32 %v383, %v383
        %v457 = vmul.f32 %v384, %v384
        %v458 = vsel %vm393, %v450, 0.0
        %459 = vadd.xlane.f32.xlu0 %v458
        %v460 = vpop.xlane.xlu0 %459
        %v461 = vsel %vm393, %v451, 0.0
        %462 = vadd.xlane.f32.xlu0 %v461
        %v463 = vpop.xlane.xlu0 %462
        %v464 = vsel %vm393, %v452, 0.0
        %465 = vadd.xlane.f32.xlu0 %v464
        %v466 = vpop.xlane.xlu0 %465
        %v467 = vsel %vm393, %v453, 0.0
        %468 = vadd.xlane.f32.xlu0 %v467
        %v469 = vpop.xlane.xlu0 %468
        %v470 = vsel %vm393, %v454, 0.0
        %471 = vadd.xlane.f32.xlu0 %v470
        %v472 = vpop.xlane.xlu0 %471
        %v473 = vsel %vm393, %v455, 0.0
        %474 = vadd.xlane.f32.xlu0 %v473
        %v475 = vpop.xlane.xlu0 %474
        %v476 = vsel %vm393, %v456, 0.0
        %477 = vadd.xlane.f32.xlu0 %v476
        %v478 = vpop.xlane.xlu0 %477
        %v479 = vsel %vm393, %v457, 0.0
        %480 = vadd.xlane.f32.xlu0 %v479
        %v481 = vpop.xlane.xlu0 %480
        %v482 = vmul.f32 %v385, %v385
        %v483 = vmul.f32 %v386, %v386
        %v484 = vmul.f32 %v387, %v387
        %v485 = vmul.f32 %v388, %v388
        %v486 = vmul.f32 %v389, %v389
        %v487 = vmul.f32 %v390, %v390
        %v488 = vmul.f32 %v391, %v391
        %v489 = vmul.f32 %v392, %v392
        %v490 = vsel %vm393, %v482, 0.0
        %491 = vadd.xlane.f32.xlu0 %v490
        %v492 = vpop.xlane.xlu0 %491
        %v493 = vsel %vm393, %v483, 0.0
        %494 = vadd.xlane.f32.xlu0 %v493
        %v495 = vpop.xlane.xlu0 %494
        %v496 = vsel %vm393, %v484, 0.0
        %497 = vadd.xlane.f32.xlu0 %v496
        %v498 = vpop.xlane.xlu0 %497
        %v499 = vsel %vm393, %v485, 0.0
        %500 = vadd.xlane.f32.xlu0 %v499
        %v501 = vpop.xlane.xlu0 %500
        %v502 = vsel %vm393, %v486, 0.0
        %503 = vadd.xlane.f32.xlu0 %v502
        %v504 = vpop.xlane.xlu0 %503
        %v505 = vsel %vm393, %v487, 0.0
        %506 = vadd.xlane.f32.xlu0 %v505
        %v507 = vpop.xlane.xlu0 %506
        %v508 = vsel %vm393, %v488, 0.0
        %509 = vadd.xlane.f32.xlu0 %v508
        %v510 = vpop.xlane.xlu0 %509
        %v511 = vsel %vm393, %v489, 0.0
        %512 = vadd.xlane.f32.xlu0 %v511
        %v513 = vpop.xlane.xlu0 %512
        %v514 = vadd.f32 %v460, %v492
        %v515 = vadd.f32 %v463, %v495
        %v516 = vadd.f32 %v466, %v498
        %v517 = vadd.f32 %v469, %v501
        %v518 = vadd.f32 %v472, %v504
        %v519 = vadd.f32 %v475, %v507
        %v520 = vadd.f32 %v478, %v510
        %v521 = vadd.f32 %v481, %v513
        %v522 = vmul.f32 %v442, 0.0078125
        %v523 = vmul.f32 %v443, 0.0078125
        %v524 = vmul.f32 %v444, 0.0078125
        %v525 = vmul.f32 %v445, 0.0078125
        %v526 = vmul.f32 %v446, 0.0078125
        %v527 = vmul.f32 %v447, 0.0078125
        %v528 = vmul.f32 %v448, 0.0078125
        %v529 = vmul.f32 %v449, 0.0078125
        %v530 = vmul.f32 %v514, 0.0078125
        %v531 = vmul.f32 %v515, 0.0078125
        %v532 = vmul.f32 %v516, 0.0078125
        %v533 = vmul.f32 %v517, 0.0078125
        %v534 = vmul.f32 %v518, 0.0078125
        %v535 = vmul.f32 %v519, 0.0078125
        %v536 = vmul.f32 %v520, 0.0078125
        %v537 = vmul.f32 %v521, 0.0078125
        %v538 = vmul.f32 %v522, %v522
        %v539 = vmul.f32 %v523, %v523
        %v540 = vmul.f32 %v524, %v524
        %v541 = vmul.f32 %v525, %v525
        %v542 = vmul.f32 %v526, %v526
        %v543 = vmul.f32 %v527, %v527
        %v544 = vmul.f32 %v528, %v528
        %v545 = vmul.f32 %v529, %v529
        %v546 = vsub.f32 %v530, %v538
        %v547 = vsub.f32 %v531, %v539
        %v548 = vsub.f32 %v532, %v540
        %v549 = vsub.f32 %v533, %v541
        %v550 = vsub.f32 %v534, %v542
        %v551 = vsub.f32 %v535, %v543
        %v552 = vsub.f32 %v536, %v544
        %v553 = vsub.f32 %v537, %v545
        %v554 = vmax.f32 %v546, 0.0
        %v555 = vmax.f32 %v547, 0.0
        %v556 = vmax.f32 %v548, 0.0
        %v557 = vmax.f32 %v549, 0.0
        %v558 = vmax.f32 %v550, 0.0
        %v559 = vmax.f32 %v551, 0.0
        %v560 = vmax.f32 %v552, 0.0
        %v561 = vmax.f32 %v553, 0.0
        %v562 = vadd.f32 %v554, 1e-05
        %v563 = vadd.f32 %v555, 1e-05
        %v564 = vadd.f32 %v556, 1e-05
        %v565 = vadd.f32 %v557, 1e-05
        %v566 = vadd.f32 %v558, 1e-05
        %v567 = vadd.f32 %v559, 1e-05
        %v568 = vadd.f32 %v560, 1e-05
        %v569 = vadd.f32 %v561, 1e-05
        %v570 = vrsqrt.pop %v562
        %v571 = vrsqrt.pop %v563
        %v572 = vrsqrt.pop %v564
        %v573 = vrsqrt.pop %v565
        %v574 = vrsqrt.pop %v566
        %v575 = vrsqrt.pop %v567
        %v576 = vrsqrt.pop %v568
        %v577 = vrsqrt.pop %v569
        %v578 = vsub.f32 %v377, %v522
        %v579 = vsub.f32 %v378, %v523
        %v580 = vsub.f32 %v379, %v524
        %v581 = vsub.f32 %v380, %v525
        %v582 = vsub.f32 %v381, %v526
        %v583 = vsub.f32 %v382, %v527
        %v584 = vsub.f32 %v383, %v528
        %v585 = vsub.f32 %v384, %v529
        %v586 = vsub.f32 %v385, %v522
        %v587 = vsub.f32 %v386, %v523
        %v588 = vsub.f32 %v387, %v524
        %v589 = vsub.f32 %v388, %v525
        %v590 = vsub.f32 %v389, %v526
        %v591 = vsub.f32 %v390, %v527
        %v592 = vsub.f32 %v391, %v528
        %v593 = vsub.f32 %v392, %v529
        %v594 = vld [vmem:[%s2] sm:$0xff]
        %v595 = vld [vmem:[%s2 + $0x8] sm:$0xff]
        %v596 = vld [vmem:[%s2 + $0x10] sm:$0xff]
        %v597 = vld [vmem:[%s2 + $0x18] sm:$0xff]
        %v598 = vld [vmem:[%s2 + $0x20] sm:$0xff]
        %v599 = vld [vmem:[%s2 + $0x28] sm:$0xff]
        %v600 = vld [vmem:[%s2 + $0x30] sm:$0xff]
        %v601 = vld [vmem:[%s2 + $0x38] sm:$0xff]
        %v602 = vld [vmem:[%s3] sm:$0xff]
        %v603 = vld [vmem:[%s3 + $0x8] sm:$0xff]
        %v604 = vld [vmem:[%s3 + $0x10] sm:$0xff]
        %v605 = vld [vmem:[%s3 + $0x18] sm:$0xff]
        %v606 = vld [vmem:[%s3 + $0x20] sm:$0xff]
        %v607 = vld [vmem:[%s3 + $0x28] sm:$0xff]
        %v608 = vld [vmem:[%s3 + $0x30] sm:$0xff]
        %v609 = vld [vmem:[%s3 + $0x38] sm:$0xff]
        %v611 = vsel %vm393, %v586, 0
        %v614 = vsel %vm393, %v587, 0
        %v617 = vsel %vm393, %v588, 0
        %v620 = vsel %vm393, %v589, 0
        %v623 = vsel %vm393, %v590, 0
        %v626 = vsel %vm393, %v591, 0
        %v629 = vsel %vm393, %v592, 0
        %v632 = vsel %vm393, %v593, 0
        %634 = vmatprep.subr.mxu0 0.0
        %635 = vmatpush1.msra.mxu0 0.0
        %636 = vmatprep.subr.mxu0 0.0
        %637 = vmatpush1.msra.mxu0 0.0
        %638 = vmatprep.subr.mxu0 0.0
        %639 = vmatpush1.msra.mxu0 0.0
        %640 = vmatprep.subr.mxu0 0.0
        %641 = vmatpush1.msra.mxu0 0.0
        %642 = vmatprep.subr.mxu0 0.0
        %643 = vmatpush1.msra.mxu0 0.0
        %644 = vmatprep.subr.mxu0 0.0
        %645 = vmatpush1.msra.mxu0 0.0
        %646 = vmatprep.subr.mxu0 0.0
        %647 = vmatpush1.msra.mxu0 0.0
        %648 = vmatprep.subr.mxu0 0.0
        %649 = vmatpush1.msra.mxu0 0.0
        %650 = vmatprep.subr.mxu0 0.0
        %651 = vmatpush1.msra.mxu0 %v609
        %652 = vmatprep.subr.mxu0 0.0
        %653 = vmatpush1.msra.mxu0 %v608
        %654 = vmatprep.subr.mxu0 0.0
        %655 = vmatpush1.msra.mxu0 %v607
        %656 = vmatprep.subr.mxu0 0.0
        %657 = vmatpush1.msra.mxu0 %v606
        %658 = vmatprep.subr.mxu0 0.0
        %659 = vmatpush1.msra.mxu0 %v605
        %660 = vmatprep.subr.mxu0 0.0
        %661 = vmatpush1.msra.mxu0 %v604
        %662 = vmatprep.subr.mxu0 0.0
        %663 = vmatpush1.msra.mxu0 %v603
        %664 = vmatprep.subr.mxu0 0.0
        %665 = vmatpush1.msra.mxu0 %v602
        %666 = vmatprep.subr.mxu0 0.0
        %667 = vmatpush2.msra.mxu0 0.0
        %668 = vmatprep.subr.mxu0 0.0
        %669 = vmatpush2.msra.mxu0 0.0
        %670 = vmatprep.subr.mxu0 0.0
        %671 = vmatpush2.msra.mxu0 0.0
        %672 = vmatprep.subr.mxu0 0.0
        %673 = vmatpush2.msra.mxu0 0.0
        %674 = vmatprep.subr.mxu0 0.0
        %675 = vmatpush2.msra.mxu0 0.0
        %676 = vmatprep.subr.mxu0 0.0
        %677 = vmatpush2.msra.mxu0 0.0
        %678 = vmatprep.subr.mxu0 0.0
        %679 = vmatpush2.msra.mxu0 0.0
        %680 = vmatprep.subr.mxu0 0.0
        %681 = vmatpush2.msra.mxu0 0.0
        %682 = vmatprep.subr.mxu0 0.0
        %683 = vmatpush2.msra.mxu0 0.0
        %684 = vmatprep.subr.mxu0 0.0
        %685 = vmatpush2.msra.mxu0 0.0
        %686 = vmatprep.subr.mxu0 0.0
        %687 = vmatpush2.msra.mxu0 0.0
        %688 = vmatprep.subr.mxu0 0.0
        %689 = vmatpush2.msra.mxu0 0.0
        %690 = vmatprep.subr.mxu0 0.0
        %691 = vmatpush2.msra.mxu0 0.0
        %692 = vmatprep.subr.mxu0 0.0
        %693 = vmatpush2.msra.mxu0 0.0
        %694 = vmatprep.subr.mxu0 0.0
        %695 = vmatpush2.msra.mxu0 0.0
        %696 = vmatprep.subr.mxu0 0.0
        %697 = vmatpush2.msra.mxu0 0.0
        %698 = vmatprep.mubr.f32.mxu0 0.0
        %699 = vmatmul.mubr.f32.gmra.mxu0 %v611
        %v700 = vpop.f32.mrf.mxu0
        %v701 = vadd.f32 0.0, %v700
        %v702 = vpop.f32.mrf.mxu0
        %703 = vmatprep.mubr.f32.mxu0 0.0
        %704 = vmatmul.mubr.f32.gmra.mxu0 %v614
        %v705 = vpop.f32.mrf.mxu0
        %v706 = vadd.f32 0.0, %v705
        %v707 = vpop.f32.mrf.mxu0
        %708 = vmatprep.mubr.f32.mxu0 0.0
        %709 = vmatmul.mubr.f32.gmra.mxu0 %v617
        %v710 = vpop.f32.mrf.mxu0
        %v711 = vadd.f32 0.0, %v710
        %v712 = vpop.f32.mrf.mxu0
        %713 = vmatprep.mubr.f32.mxu0 0.0
        %714 = vmatmul.mubr.f32.gmra.mxu0 %v620
        %v715 = vpop.f32.mrf.mxu0
        %v716 = vadd.f32 0.0, %v715
        %v717 = vpop.f32.mrf.mxu0
        %718 = vmatprep.mubr.f32.mxu0 0.0
        %719 = vmatmul.mubr.f32.gmra.mxu0 %v623
        %v720 = vpop.f32.mrf.mxu0
        %v721 = vadd.f32 0.0, %v720
        %v722 = vpop.f32.mrf.mxu0
        %723 = vmatprep.mubr.f32.mxu0 0.0
        %724 = vmatmul.mubr.f32.gmra.mxu0 %v626
        %v725 = vpop.f32.mrf.mxu0
        %v726 = vadd.f32 0.0, %v725
        %v727 = vpop.f32.mrf.mxu0
        %728 = vmatprep.mubr.f32.mxu0 0.0
        %729 = vmatmul.mubr.f32.gmra.mxu0 %v629
        %v730 = vpop.f32.mrf.mxu0
        %v731 = vadd.f32 0.0, %v730
        %v732 = vpop.f32.mrf.mxu0
        %733 = vmatprep.mubr.f32.mxu0 0.0
        %734 = vmatmul.mubr.f32.gmra.mxu0 %v632
        %v735 = vpop.f32.mrf.mxu0
        %v736 = vadd.f32 0.0, %v735
        %v737 = vpop.f32.mrf.mxu0
        %738 = vdwg.mxu0
        %v740 = vsel %vm393, %v578, 0
        %v743 = vsel %vm393, %v579, 0
        %v746 = vsel %vm393, %v580, 0
        %v749 = vsel %vm393, %v581, 0
        %v752 = vsel %vm393, %v582, 0
        %v755 = vsel %vm393, %v583, 0
        %v758 = vsel %vm393, %v584, 0
        %v761 = vsel %vm393, %v585, 0
        %763 = vmatprep.subr.mxu0 0.0
        %764 = vmatpush1.msra.mxu0 0.0
        %765 = vmatprep.subr.mxu0 0.0
        %766 = vmatpush1.msra.mxu0 0.0
        %767 = vmatprep.subr.mxu0 0.0
        %768 = vmatpush1.msra.mxu0 0.0
        %769 = vmatprep.subr.mxu0 0.0
        %770 = vmatpush1.msra.mxu0 0.0
        %771 = vmatprep.subr.mxu0 0.0
        %772 = vmatpush1.msra.mxu0 0.0
        %773 = vmatprep.subr.mxu0 0.0
        %774 = vmatpush1.msra.mxu0 0.0
        %775 = vmatprep.subr.mxu0 0.0
        %776 = vmatpush1.msra.mxu0 0.0
        %777 = vmatprep.subr.mxu0 0.0
        %778 = vmatpush1.msra.mxu0 0.0
        %779 = vmatprep.subr.mxu0 0.0
        %780 = vmatpush1.msra.mxu0 %v601
        %781 = vmatprep.subr.mxu0 0.0
        %782 = vmatpush1.msra.mxu0 %v600
        %783 = vmatprep.subr.mxu0 0.0
        %784 = vmatpush1.msra.mxu0 %v599
        %785 = vmatprep.subr.mxu0 0.0
        %786 = vmatpush1.msra.mxu0 %v598
        %787 = vmatprep.subr.mxu0 0.0
        %788 = vmatpush1.msra.mxu0 %v597
        %789 = vmatprep.subr.mxu0 0.0
        %790 = vmatpush1.msra.mxu0 %v596
        %791 = vmatprep.subr.mxu0 0.0
        %792 = vmatpush1.msra.mxu0 %v595
        %793 = vmatprep.subr.mxu0 0.0
        %794 = vmatpush1.msra.mxu0 %v594
        %795 = vmatprep.subr.mxu0 0.0
        %796 = vmatpush2.msra.mxu0 0.0
        %797 = vmatprep.subr.mxu0 0.0
        %798 = vmatpush2.msra.mxu0 0.0
        %799 = vmatprep.subr.mxu0 0.0
        %800 = vmatpush2.msra.mxu0 0.0
        %801 = vmatprep.subr.mxu0 0.0
        %802 = vmatpush2.msra.mxu0 0.0
        %803 = vmatprep.subr.mxu0 0.0
        %804 = vmatpush2.msra.mxu0 0.0
        %805 = vmatprep.subr.mxu0 0.0
        %806 = vmatpush2.msra.mxu0 0.0
        %807 = vmatprep.subr.mxu0 0.0
        %808 = vmatpush2.msra.mxu0 0.0
        %809 = vmatprep.subr.mxu0 0.0
        %810 = vmatpush2.msra.mxu0 0.0
        %811 = vmatprep.subr.mxu0 0.0
        %812 = vmatpush2.msra.mxu0 0.0
        %813 = vmatprep.subr.mxu0 0.0
        %814 = vmatpush2.msra.mxu0 0.0
        %815 = vmatprep.subr.mxu0 0.0
        %816 = vmatpush2.msra.mxu0 0.0
        %817 = vmatprep.subr.mxu0 0.0
        %818 = vmatpush2.msra.mxu0 0.0
        %819 = vmatprep.subr.mxu0 0.0
        %820 = vmatpush2.msra.mxu0 0.0
        %821 = vmatprep.subr.mxu0 0.0
        %822 = vmatpush2.msra.mxu0 0.0
        %823 = vmatprep.subr.mxu0 0.0
        %824 = vmatpush2.msra.mxu0 0.0
        %825 = vmatprep.subr.mxu0 0.0
        %826 = vmatpush2.msra.mxu0 0.0
        %827 = vmatprep.mubr.f32.mxu0 0.0
        %828 = vmatmul.mubr.f32.gmra.mxu0 %v740
        %v829 = vpop.f32.mrf.mxu0
        %v830 = vadd.f32 %v701, %v829
        %v831 = vpop.f32.mrf.mxu0
        %832 = vmatprep.mubr.f32.mxu0 0.0
        %833 = vmatmul.mubr.f32.gmra.mxu0 %v743
        %v834 = vpop.f32.mrf.mxu0
        %v835 = vadd.f32 %v706, %v834
        %v836 = vpop.f32.mrf.mxu0
        %837 = vmatprep.mubr.f32.mxu0 0.0
        %838 = vmatmul.mubr.f32.gmra.mxu0 %v746
        %v839 = vpop.f32.mrf.mxu0
        %v840 = vadd.f32 %v711, %v839
        %v841 = vpop.f32.mrf.mxu0
        %842 = vmatprep.mubr.f32.mxu0 0.0
        %843 = vmatmul.mubr.f32.gmra.mxu0 %v749
        %v844 = vpop.f32.mrf.mxu0
        %v845 = vadd.f32 %v716, %v844
        %v846 = vpop.f32.mrf.mxu0
        %847 = vmatprep.mubr.f32.mxu0 0.0
        %848 = vmatmul.mubr.f32.gmra.mxu0 %v752
        %v849 = vpop.f32.mrf.mxu0
        %v850 = vadd.f32 %v721, %v849
        %v851 = vpop.f32.mrf.mxu0
        %852 = vmatprep.mubr.f32.mxu0 0.0
        %853 = vmatmul.mubr.f32.gmra.mxu0 %v755
        %v854 = vpop.f32.mrf.mxu0
        %v855 = vadd.f32 %v726, %v854
        %v856 = vpop.f32.mrf.mxu0
        %857 = vmatprep.mubr.f32.mxu0 0.0
        %858 = vmatmul.mubr.f32.gmra.mxu0 %v758
        %v859 = vpop.f32.mrf.mxu0
        %v860 = vadd.f32 %v731, %v859
        %v861 = vpop.f32.mrf.mxu0
        %862 = vmatprep.mubr.f32.mxu0 0.0
        %863 = vmatmul.mubr.f32.gmra.mxu0 %v761
        %v864 = vpop.f32.mrf.mxu0
        %v865 = vadd.f32 %v736, %v864
        %v866 = vpop.f32.mrf.mxu0
        %867 = vdwg.mxu0
        %v868 = vmul.f32 %v830, %v570
        %v869 = vmul.f32 %v835, %v571
        %v870 = vmul.f32 %v840, %v572
        %v871 = vmul.f32 %v845, %v573
        %v872 = vmul.f32 %v850, %v574
        %v873 = vmul.f32 %v855, %v575
        %v874 = vmul.f32 %v860, %v576
        %v875 = vmul.f32 %v865, %v577
        %v876 = vld [vmem:[%s4] sm:$0x1]
        %v878 = vlaneseq
        %v879 = vshrl.u32 %v878, 7
        %v880 = vsub.s32 0, %v879
        %v881 = vrot.slane %v876, %v880
        %v883 = vadd.f32 %v868, %v881
        %v884 = vadd.f32 %v869, %v881
        %v885 = vadd.f32 %v870, %v881
        %v886 = vadd.f32 %v871, %v881
        %v887 = vadd.f32 %v872, %v881
        %v888 = vadd.f32 %v873, %v881
        %v889 = vadd.f32 %v874, %v881
        %v890 = vadd.f32 %v875, %v881
        %891 = vst.msk [vmem:[%s373] sm:$0xff] %vm393, %v883
        %892 = vst.msk [vmem:[%s373 + $0x8] sm:$0xff] %vm393, %v884
        %893 = vst.msk [vmem:[%s373 + $0x10] sm:$0xff] %vm393, %v885
        %894 = vst.msk [vmem:[%s373 + $0x18] sm:$0xff] %vm393, %v886
        %895 = vst.msk [vmem:[%s373 + $0x20] sm:$0xff] %vm393, %v887
        %896 = vst.msk [vmem:[%s373 + $0x28] sm:$0xff] %vm393, %v888
        %897 = vst.msk [vmem:[%s373 + $0x30] sm:$0xff] %vm393, %v889
        %898 = vst.msk [vmem:[%s373 + $0x38] sm:$0xff] %vm393, %v890
        %s899 = sand.u32 %s142, 1
        %s900 = scalar_lea.sflag [#allocation5], %s899
        %s901 = sand.u32 %s142, 1
        %s902 = smul.addr %s901, 64
        %s903 = scalar_lea.vmem [#allocation4], %s902
        // Predicated region
        $region117: #{patch_merging.1} parent=107 // pred_check
          %p904 = pneg %p152
        $region118: #{patch_merging.1} parent=107 // pred_check_branch
          %906 = sbr.rel (%p904) target = $region120
        $region119: #{patch_merging.1} parent=107 // pred_region
          %s907 = smul.u32 8, %s19
          %s909 = ssub.s32 1024, 1024
          %910 = vsyncadd %s900, %s909
          %s911 = smul.addr %s907, 128
          %s912 = scalar_lea.hbm %s5, %s911
          %s913 = sshll.u32 %s903, 4
          %s914 = int_to_ptr.vmem [resolvable:$true] %s913
          %919 = dma.vmem_to_hbm [thread:$0]  %s914, 1024, %s912, %s900, 128, 128, 8
        $region120: #{patch_merging.1} parent=107 // pred_fallthru
          _
      $region108: #{patch_merging.1} parent=5 // pred_fallthru
        _
      %p920 = scmp.le.s32.totalorder 2, %s14
      // Predicated region
      $region121: #{patch_merging.1} parent=5 // pred_check
        %p921 = pneg %p920
      $region122: #{patch_merging.1} parent=5 // pred_check_branch
        %923 = sbr.rel (%p921) target = $region124
      $region123: #{patch_merging.1} parent=5 // pred_region
        %s924 = ssub.s32 %s14, 2
        // Predicated region
        $region125: #{patch_merging.1} parent=123 // pred_check
          %p925 = pneg %p158
        $region126: #{patch_merging.1} parent=123 // pred_check_branch
          %927 = sbr.rel (%p925) target = $region128
        $region127: #{patch_merging.1} parent=123 // pred_region
          %s928 = sand.u32 %s143, 1
          %s929 = scalar_lea.sflag [#allocation5], %s928
          %s930 = sand.u32 %s143, 1
          %s931 = smul.addr %s930, 64
          %s932 = scalar_lea.vmem [#allocation4], %s931
          %933 = dma.done %s929, 1024
        $region128: #{patch_merging.1} parent=123 // pred_fallthru
          _
      $region124: #{patch_merging.1} parent=5 // pred_fallthru
        _
    $region6: #{patch_merging.1} parent=1 // loop_footer
      %s18 = sadd.s32 1, %s14
    $region7: #{patch_merging.1} parent=1 // loop_footer_branch
      %13 = sbr.rel target = $region3
    $region8: #{patch_merging.1} parent=1 // loop_exit
      _
    %934 = vsyncpa [#allocation5], 1
    %s935 = scalar_lea.sflag [#allocation5], 1
    %936 = vsyncpa %s935, 1

</llo_original>
